<compile_context>
chip_gen: v5e
topology: v5e:2x2
jax: 0.10.0
libtpu: 0.0.40
codegen_flags: <defaults>
</compile_context>

<pallas_src>
import jax
import jax.numpy as jnp
from jax.experimental import pallas as pl
from jax.experimental.pallas import tpu as pltpu

_LANE = 128  # TPU lane width
_SUBLANE = 8  # TPU sublane width (f32)


def _round_up(x, m):
    return (x + m - 1) // m * m


def _dual_classifier_kernel(x1_ref, x2_ref, w1a_ref, w1b_ref, w2_ref, w3_ref,
                            o_ref):
    # x1/x2: [TB, H] bf16, w1a/w1b: [H, inter_p], w2: [inter_p, half_p],
    # w3: [half_p, classes_p], o: [TB, classes_p] f32.
    # First linear: concat([x1, x2], -1) @ W1 == x1 @ W1[:H] + x2 @ W1[H:]
    h1 = jnp.dot(x1_ref[...], w1a_ref[...], preferred_element_type=jnp.float32)
    h1 = h1 + jnp.dot(x2_ref[...], w1b_ref[...],
                      preferred_element_type=jnp.float32)
    h1 = jnp.maximum(h1, 0.0).astype(jnp.bfloat16)          # ReLU

    h2 = jnp.dot(h1, w2_ref[...], preferred_element_type=jnp.float32)
    h2 = jnp.maximum(h2, 0.0).astype(jnp.bfloat16)          # ReLU

    logits = jnp.dot(h2, w3_ref[...], preferred_element_type=jnp.float32)
    o_ref[...] = logits.astype(o_ref.dtype)


def dual_classifier(emb_1, emb_2, w1, w2, w3, *, tile_b=256):
    """Forward pass of DualClassifier.

    emb_1, emb_2 : [B, S, H]
    w1 : [2H, inter]       (PyTorch ffn[0].weight.T)
    w2 : [inter, inter//2] (PyTorch ffn[2].weight.T)
    w3 : [inter//2, C]     (PyTorch output.weight.T)
    returns logits [B, C] (float32)
    """
    B, _, H = emb_1.shape
    two_h, inter = w1.shape
    half = w2.shape[1]
    classes = w3.shape[1]
    assert two_h == 2 * H

    # CLS-token slices only — never build a [B, S, 2H] concat.
    x1 = emb_1[:, 0, :].astype(jnp.bfloat16)                 # [B, H]
    x2 = emb_2[:, 0, :].astype(jnp.bfloat16)                 # [B, H]

    # Lane-pad feature dims to 128 (zeros are exact through ReLU and matmul).
    inter_p = _round_up(inter, _LANE)
    half_p = _round_up(half, _LANE)
    classes_p = _round_up(classes, _LANE)

    # bf16 weights, W1 split into the two halves of its input dim.
    # TODO(synk): in a real model, pre-pad/split/cast the weights once at
    # load time instead of per call.
    w1_b = w1.astype(jnp.bfloat16)
    w1a = jnp.zeros((H, inter_p), jnp.bfloat16).at[:, :inter].set(w1_b[:H, :])
    w1b = jnp.zeros((H, inter_p), jnp.bfloat16).at[:, :inter].set(w1_b[H:, :])
    w2p = jnp.zeros((inter_p, half_p), jnp.bfloat16).at[:inter, :half].set(
        w2.astype(jnp.bfloat16))
    w3p = jnp.zeros((half_p, classes_p), jnp.bfloat16).at[:half, :classes].set(
        w3.astype(jnp.bfloat16))

    # Batch tiling: TB multiple of 8, pipelined & parallel over the grid.
    tb = min(tile_b, _round_up(B, _SUBLANE))
    b_pad = _round_up(B, tb)
    if b_pad != B:
        x1 = jnp.pad(x1, ((0, b_pad - B), (0, 0)))
        x2 = jnp.pad(x2, ((0, b_pad - B), (0, 0)))

    grid = (pl.cdiv(b_pad, tb),)

    # Explicit VMEM budget: double-buffered blocks + headroom.
    bf16_bytes = 2
    in_block_bytes = (
        2 * tb * H * bf16_bytes            # x1, x2 tiles
        + 2 * H * inter_p * bf16_bytes     # w1a, w1b
        + inter_p * half_p * bf16_bytes    # w2
        + half_p * classes_p * bf16_bytes  # w3
    )
    out_block_bytes = tb * classes_p * 4
    vmem_limit = max(2 * (in_block_bytes + out_block_bytes) + (2 << 20),
                     16 << 20)
    vmem_limit = min(vmem_limit, 100 << 20)

    out = pl.pallas_call(
        _dual_classifier_kernel,
        out_shape=jax.ShapeDtypeStruct((b_pad, classes_p), jnp.float32),
        grid=grid,
        in_specs=[
            pl.BlockSpec((tb, H), lambda i: (i, 0)),             # x1 tile
            pl.BlockSpec((tb, H), lambda i: (i, 0)),             # x2 tile
            pl.BlockSpec((H, inter_p), lambda i: (0, 0)),        # w1[:H]
            pl.BlockSpec((H, inter_p), lambda i: (0, 0)),        # w1[H:]
            pl.BlockSpec((inter_p, half_p), lambda i: (0, 0)),   # w2
            pl.BlockSpec((half_p, classes_p), lambda i: (0, 0)), # w3
        ],
        out_specs=pl.BlockSpec((tb, classes_p), lambda i: (i, 0)),
        compiler_params=pltpu.CompilerParams(
            dimension_semantics=("parallel",),
            vmem_limit_bytes=int(vmem_limit),
        ),
    )(x1, x2, w1a, w1b, w2p, w3p)

    return out[:B, :classes]


def _init_linear_weight(key, in_features, out_features):
    # Deterministic stand-in for nn.Linear default init (uniform +/- 1/sqrt(fan_in)).
    bound = 1.0 / jnp.sqrt(jnp.float32(in_features))
    # Stored as [in, out] so the kernel computes x @ W directly.
    return jax.random.uniform(
        key, (in_features, out_features), dtype=jnp.float32,
        minval=-bound, maxval=bound)


if __name__ == "__main__":
    # Small shapes consistent with the module.
    B, S, H = 2, 8, 32          # batch, seq, hidden_dim
    inter = 32                   # inter_dim
    classes = 4

    key = jax.random.PRNGKey(0)
    k1, k2, k3, k4, k5 = jax.random.split(key, 5)

    emb_1 = jax.random.normal(k1, (B, S, H), dtype=jnp.float32)
    emb_2 = jax.random.normal(k2, (B, S, H), dtype=jnp.float32)

    w1 = _init_linear_weight(k3, 2 * H, inter)        # Linear(2H -> inter)
    w2 = _init_linear_weight(k4, inter, inter // 2)   # Linear(inter -> inter//2)
    w3 = _init_linear_weight(k5, inter // 2, classes) # Linear(inter//2 -> classes)

    logits = dual_classifier(emb_1, emb_2, w1, w2, w3)
    jax.block_until_ready(logits)
    assert logits.shape == (B, classes)

    # Pure-JAX reference: bf16 params/activations with f32 accumulation,
    # matching the kernel's numerics.
    x_ref = jnp.concatenate([emb_1[:, 0, :], emb_2[:, 0, :]], axis=-1)
    xb = x_ref.astype(jnp.bfloat16).astype(jnp.float32)
    w1f = w1.astype(jnp.bfloat16).astype(jnp.float32)
    w2f = w2.astype(jnp.bfloat16).astype(jnp.float32)
    w3f = w3.astype(jnp.bfloat16).astype(jnp.float32)
    h1 = jnp.maximum(xb @ w1f, 0.0).astype(jnp.bfloat16).astype(jnp.float32)
    h2 = jnp.maximum(h1 @ w2f, 0.0).astype(jnp.bfloat16).astype(jnp.float32)
    ref = h2 @ w3f

    assert jnp.allclose(logits, ref, atol=2e-2, rtol=2e-2), (logits, ref)

    print("KERNEL_OK")
</pallas_src>

<mosaic_0001>
module attributes {stable_mosaic.version = 11 : i64} {
  func.func @_dual_classifier_kernel(%arg0: i32, %arg1: memref<8x32xbf16, #tpu.memory_space<vmem>>, %arg2: memref<8x32xbf16, #tpu.memory_space<vmem>>, %arg3: memref<32x128xbf16, #tpu.memory_space<vmem>>, %arg4: memref<32x128xbf16, #tpu.memory_space<vmem>>, %arg5: memref<128x128xbf16, #tpu.memory_space<vmem>>, %arg6: memref<128x128xbf16, #tpu.memory_space<vmem>>, %arg7: memref<8x128xf32, #tpu.memory_space<vmem>>) attributes {dimension_semantics = [#tpu.dimension_semantics<parallel>], iteration_bounds = array<i64: 1>, scalar_prefetch = 0 : i64, scratch_operands = 0 : i64, tpu.core_type = #tpu.core_type<tc>, window_params = [{transform_indices = @transform_0, window_bounds = array<i64: 8, 32>}, {transform_indices = @transform_1, window_bounds = array<i64: 8, 32>}, {pipeline_mode = #tpu.pipeline_mode<synchronous>, transform_indices = @transform_2, window_bounds = array<i64: 32, 128>}, {pipeline_mode = #tpu.pipeline_mode<synchronous>, transform_indices = @transform_3, window_bounds = array<i64: 32, 128>}, {pipeline_mode = #tpu.pipeline_mode<synchronous>, transform_indices = @transform_4, window_bounds = array<i64: 128, 128>}, {pipeline_mode = #tpu.pipeline_mode<synchronous>, transform_indices = @transform_5, window_bounds = array<i64: 128, 128>}, {transform_indices = @transform_6, window_bounds = array<i64: 8, 128>}]} {
    %c0 = arith.constant 0 : index
    %c0_0 = arith.constant 0 : index
    %0 = vector.load %arg1[%c0, %c0_0] : memref<8x32xbf16, #tpu.memory_space<vmem>>, vector<8x32xbf16>
    %c0_1 = arith.constant 0 : index
    %c0_2 = arith.constant 0 : index
    %1 = vector.load %arg3[%c0_1, %c0_2] : memref<32x128xbf16, #tpu.memory_space<vmem>>, vector<32x128xbf16>
    %cst = arith.constant dense<0.000000e+00> : vector<8x128xf32>
    %2 = tpu.matmul %0, %1, %cst {dimension_numbers = #tpu.dot_dimension_numbers<[1], [0], [0], [1], [0, 0, 1, 1], [], []>} : vector<8x32xbf16>, vector<32x128xbf16>, vector<8x128xf32> -> vector<8x128xf32>
    %c0_3 = arith.constant 0 : index
    %c0_4 = arith.constant 0 : index
    %3 = vector.load %arg2[%c0_3, %c0_4] : memref<8x32xbf16, #tpu.memory_space<vmem>>, vector<8x32xbf16>
    %c0_5 = arith.constant 0 : index
    %c0_6 = arith.constant 0 : index
    %4 = vector.load %arg4[%c0_5, %c0_6] : memref<32x128xbf16, #tpu.memory_space<vmem>>, vector<32x128xbf16>
    %cst_7 = arith.constant dense<0.000000e+00> : vector<8x128xf32>
    %5 = tpu.matmul %3, %4, %cst_7 {dimension_numbers = #tpu.dot_dimension_numbers<[1], [0], [0], [1], [0, 0, 1, 1], [], []>} : vector<8x32xbf16>, vector<32x128xbf16>, vector<8x128xf32> -> vector<8x128xf32>
    %6 = arith.addf %2, %5 : vector<8x128xf32>
    %cst_8 = arith.constant 0.000000e+00 : f32
    %7 = vector.broadcast %cst_8 : f32 to vector<8x128xf32>
    %8 = arith.maximumf %6, %7 : vector<8x128xf32>
    %9 = arith.truncf %8 : vector<8x128xf32> to vector<8x128xbf16>
    %c0_9 = arith.constant 0 : index
    %c0_10 = arith.constant 0 : index
    %10 = vector.load %arg5[%c0_9, %c0_10] : memref<128x128xbf16, #tpu.memory_space<vmem>>, vector<128x128xbf16>
    %cst_11 = arith.constant dense<0.000000e+00> : vector<8x128xf32>
    %11 = tpu.matmul %9, %10, %cst_11 {dimension_numbers = #tpu.dot_dimension_numbers<[1], [0], [0], [1], [0, 0, 1, 1], [], []>} : vector<8x128xbf16>, vector<128x128xbf16>, vector<8x128xf32> -> vector<8x128xf32>
    %cst_12 = arith.constant 0.000000e+00 : f32
    %12 = vector.broadcast %cst_12 : f32 to vector<8x128xf32>
    %13 = arith.maximumf %11, %12 : vector<8x128xf32>
    %14 = arith.truncf %13 : vector<8x128xf32> to vector<8x128xbf16>
    %c0_13 = arith.constant 0 : index
    %c0_14 = arith.constant 0 : index
    %15 = vector.load %arg6[%c0_13, %c0_14] : memref<128x128xbf16, #tpu.memory_space<vmem>>, vector<128x128xbf16>
    %cst_15 = arith.constant dense<0.000000e+00> : vector<8x128xf32>
    %16 = tpu.matmul %14, %15, %cst_15 {dimension_numbers = #tpu.dot_dimension_numbers<[1], [0], [0], [1], [0, 0, 1, 1], [], []>} : vector<8x128xbf16>, vector<128x128xbf16>, vector<8x128xf32> -> vector<8x128xf32>
    %c0_16 = arith.constant 0 : index
    %c0_17 = arith.constant 0 : index
    %17 = vector.load %arg7[%c0_16, %c0_17] : memref<8x128xf32, #tpu.memory_space<vmem>>, vector<8x128xf32>
    tpu.vector_store %arg7[%c0_16, %c0_17], %16 {strides = array<i32>} : memref<8x128xf32, #tpu.memory_space<vmem>>, vector<8x128xf32>,
    return
  }
  func.func @transform_0(%arg0: i32) -> (i32, i32) {
    %c0_i32 = arith.constant 0 : i32
    %c0_i32_0 = arith.constant 0 : i32
    return %arg0, %c0_i32 : i32, i32
  }
  func.func @transform_1(%arg0: i32) -> (i32, i32) {
    %c0_i32 = arith.constant 0 : i32
    %c0_i32_0 = arith.constant 0 : i32
    return %arg0, %c0_i32 : i32, i32
  }
  func.func @transform_2(%arg0: i32) -> (i32, i32) {
    %c0_i32 = arith.constant 0 : i32
    %c0_i32_0 = arith.constant 0 : i32
    %c0_i32_1 = arith.constant 0 : i32
    return %c0_i32, %c0_i32_0 : i32, i32
  }
  func.func @transform_3(%arg0: i32) -> (i32, i32) {
    %c0_i32 = arith.constant 0 : i32
    %c0_i32_0 = arith.constant 0 : i32
    %c0_i32_1 = arith.constant 0 : i32
    return %c0_i32, %c0_i32_0 : i32, i32
  }
  func.func @transform_4(%arg0: i32) -> (i32, i32) {
    %c0_i32 = arith.constant 0 : i32
    %c0_i32_0 = arith.constant 0 : i32
    %c0_i32_1 = arith.constant 0 : i32
    return %c0_i32, %c0_i32_0 : i32, i32
  }
  func.func @transform_5(%arg0: i32) -> (i32, i32) {
    %c0_i32 = arith.constant 0 : i32
    %c0_i32_0 = arith.constant 0 : i32
    %c0_i32_1 = arith.constant 0 : i32
    return %c0_i32, %c0_i32_0 : i32, i32
  }
  func.func @transform_6(%arg0: i32) -> (i32, i32) {
    %c0_i32 = arith.constant 0 : i32
    %c0_i32_0 = arith.constant 0 : i32
    return %arg0, %c0_i32 : i32, i32
  }
}

</mosaic_0001>

<llo_original>
// kernel: tpu_custom_call.1
$region0: #{tpu_custom_call.1}
  #allocation0 [shape = 'u32[]', space=smem, size = 0x4, offset = 0x4, fixed_abs, tag = 'smem constant byte address 0x4 - core index']
  #allocation1 [shape = 'u32[72,128]{1,0:T(1,128)}', space=vmem, size = 0x9000, scoped, tag = 'internal scratch']
  %s0 = inlined_call_operand.hbm [shape: bf16[8,32], index: 0, kind: input, shape index: {}]
  %s1 = inlined_call_operand.hbm [shape: bf16[8,32], index: 1, kind: input, shape index: {}]
  %s2 = inlined_call_operand.hbm [shape: bf16[32,128], index: 2, kind: input, shape index: {}]
  %s3 = inlined_call_operand.hbm [shape: bf16[32,128], index: 3, kind: input, shape index: {}]
  %s4 = inlined_call_operand.hbm [shape: bf16[128,128], index: 4, kind: input, shape index: {}]
  %s5 = inlined_call_operand.hbm [shape: bf16[128,128], index: 5, kind: input, shape index: {}]
  %s6 = inlined_call_operand.hbm [shape: f32[8,128], index: 6, kind: output, shape index: {}]
  %s7 = sld [smem:[#allocation0]]
  $region58: #{tpu_custom_call.1} parent=0
    _
  %s9 = ssub.s32 1, %s7
  %s10 = scalar_select 0, %s9, %s7
  $region1: #{tpu_custom_call.1} parent=0
    #allocation2 [shape = 'u8[2048]{0}', space=vmem, size = 0x800, scoped, tag = 'input window, operand 0, single buffered']
    #allocation3 [shape = 's32[1]{0}', space=sflag, size = 0x4, scoped, tag = 'scoped memory for tpu_custom_call.1']
    #allocation4 [shape = 's32[1]{0}', space=sflag, size = 0x4, scoped, tag = 'scoped memory for tpu_custom_call.1']
    #allocation5 [shape = 'u8[2048]{0}', space=vmem, size = 0x800, scoped, tag = 'input window, operand 1, single buffered']
    #allocation6 [shape = 's32[1]{0}', space=sflag, size = 0x4, scoped, tag = 'scoped memory for tpu_custom_call.1']
    #allocation7 [shape = 'u8[8192]{0}', space=vmem, size = 0x2000, scoped, tag = 'input window, operand 2, single buffered']
    #allocation8 [shape = 'u8[8192]{0}', space=vmem, size = 0x2000, scoped, tag = 'input window, operand 3, single buffered']
    #allocation9 [shape = 's32[1]{0}', space=sflag, size = 0x4, scoped, tag = 'scoped memory for tpu_custom_call.1']
    #allocation10 [shape = 'u8[32768]{0}', space=vmem, size = 0x8000, scoped, tag = 'input window, operand 4, single buffered']
    #allocation11 [shape = 'u8[32768]{0}', space=vmem, size = 0x8000, scoped, tag = 'input window, operand 5, single buffered']
    #allocation12 [shape = 's32[1]{0}', space=sflag, size = 0x4, scoped, tag = 'scoped memory for tpu_custom_call.1']
    #allocation13 [shape = 'u8[4096]{0}', space=vmem, size = 0x1000, scoped, tag = 'output window, operand 0, single buffered']
    %11 = vsyncpa [#allocation3], 0
    %12 = vsyncpa [#allocation6], 0
    %13 = vsyncpa [#allocation9], 0
    %14 = vsyncpa [#allocation12], 0
    %15 = vsyncpa [#allocation4], 0
    // Predicated region
    $region2: #{tpu_custom_call.1} parent=1 // pred_check
      _
    $region3: #{tpu_custom_call.1} parent=1 // pred_check_branch
      %17 = sbr.rel (0) target = $region5
    $region4: #{tpu_custom_call.1} parent=1 // pred_region
      %19 = vsyncadd [#allocation3], 0
      %s21 = sshll.u32 %s0, 4
      %s22 = int_to_ptr.hbm [resolvable:$true] %s21
      %s23 = sshll.u32 [#allocation2], 4
      %s24 = int_to_ptr.vmem [resolvable:$true] %s23
      %26 = dma.hbm_to_vmem [thread:$0]  %s22, 64, %s24, [#allocation3]
    $region5: #{tpu_custom_call.1} parent=1 // pred_fallthru
      _
    // Predicated region
    $region6: #{tpu_custom_call.1} parent=1 // pred_check
      _
    $region7: #{tpu_custom_call.1} parent=1 // pred_check_branch
      %28 = sbr.rel (0) target = $region9
    $region8: #{tpu_custom_call.1} parent=1 // pred_region
      %30 = vsyncadd [#allocation6], 0
      %s32 = sshll.u32 %s1, 4
      %s33 = int_to_ptr.hbm [resolvable:$true] %s32
      %s34 = sshll.u32 [#allocation5], 4
      %s35 = int_to_ptr.vmem [resolvable:$true] %s34
      %37 = dma.hbm_to_vmem [thread:$0]  %s33, 64, %s35, [#allocation6]
    $region9: #{tpu_custom_call.1} parent=1 // pred_fallthru
      _
    // Predicated region
    $region10: #{tpu_custom_call.1} parent=1 // pred_check
      _
    $region11: #{tpu_custom_call.1} parent=1 // pred_check_branch
      %39 = sbr.rel (0) target = $region13
    $region12: #{tpu_custom_call.1} parent=1 // pred_region
      %41 = vsyncadd [#allocation6], 0
      %s42 = sshll.u32 %s2, 4
      %s43 = int_to_ptr.hbm [resolvable:$true] %s42
      %s44 = sshll.u32 [#allocation7], 4
      %s45 = int_to_ptr.vmem [resolvable:$true] %s44
      %50 = dma.hbm_to_vmem [thread:$0]  %s43, 256, %s45, [#allocation6], 64, 64, 4
    $region13: #{tpu_custom_call.1} parent=1 // pred_fallthru
      _
    // Predicated region
    $region14: #{tpu_custom_call.1} parent=1 // pred_check
      _
    $region15: #{tpu_custom_call.1} parent=1 // pred_check_branch
      %52 = sbr.rel (0) target = $region17
    $region16: #{tpu_custom_call.1} parent=1 // pred_region
      %54 = vsyncadd [#allocation9], 0
      %s55 = sshll.u32 %s3, 4
      %s56 = int_to_ptr.hbm [resolvable:$true] %s55
      %s57 = sshll.u32 [#allocation8], 4
      %s58 = int_to_ptr.vmem [resolvable:$true] %s57
      %63 = dma.hbm_to_vmem [thread:$0]  %s56, 256, %s58, [#allocation9], 64, 64, 4
    $region17: #{tpu_custom_call.1} parent=1 // pred_fallthru
      _
    // Predicated region
    $region18: #{tpu_custom_call.1} parent=1 // pred_check
      _
    $region19: #{tpu_custom_call.1} parent=1 // pred_check_branch
      %65 = sbr.rel (0) target = $region21
    $region20: #{tpu_custom_call.1} parent=1 // pred_region
      %67 = vsyncadd [#allocation9], 0
      %s68 = sshll.u32 %s4, 4
      %s69 = int_to_ptr.hbm [resolvable:$true] %s68
      %s70 = sshll.u32 [#allocation10], 4
      %s71 = int_to_ptr.vmem [resolvable:$true] %s70
      %76 = dma.hbm_to_vmem [thread:$0]  %s69, 1024, %s71, [#allocation9], 64, 64, 4
    $region21: #{tpu_custom_call.1} parent=1 // pred_fallthru
      _
    // Predicated region
    $region22: #{tpu_custom_call.1} parent=1 // pred_check
      _
    $region23: #{tpu_custom_call.1} parent=1 // pred_check_branch
      %78 = sbr.rel (0) target = $region25
    $region24: #{tpu_custom_call.1} parent=1 // pred_region
      %80 = vsyncadd [#allocation12], 0
      %s81 = sshll.u32 %s5, 4
      %s82 = int_to_ptr.hbm [resolvable:$true] %s81
      %s83 = sshll.u32 [#allocation11], 4
      %s84 = int_to_ptr.vmem [resolvable:$true] %s83
      %89 = dma.hbm_to_vmem [thread:$0]  %s82, 1024, %s84, [#allocation12], 64, 64, 4
    $region25: #{tpu_custom_call.1} parent=1 // pred_fallthru
      _
    // Predicated region
    $region26: #{tpu_custom_call.1} parent=1 // pred_check
      _
    $region27: #{tpu_custom_call.1} parent=1 // pred_check_branch
      %91 = sbr.rel (0) target = $region29
    $region28: #{tpu_custom_call.1} parent=1 // pred_region
      %93 = dma.done [#allocation3], 64
    $region29: #{tpu_custom_call.1} parent=1 // pred_fallthru
      _
    // Predicated region
    $region30: #{tpu_custom_call.1} parent=1 // pred_check
      _
    $region31: #{tpu_custom_call.1} parent=1 // pred_check_branch
      %95 = sbr.rel (0) target = $region33
    $region32: #{tpu_custom_call.1} parent=1 // pred_region
      %97 = dma.done [#allocation6], 64
    $region33: #{tpu_custom_call.1} parent=1 // pred_fallthru
      _
    // Predicated region
    $region34: #{tpu_custom_call.1} parent=1 // pred_check
      _
    $region35: #{tpu_custom_call.1} parent=1 // pred_check_branch
      %99 = sbr.rel (0) target = $region37
    $region36: #{tpu_custom_call.1} parent=1 // pred_region
      %101 = dma.done [#allocation6], 256
    $region37: #{tpu_custom_call.1} parent=1 // pred_fallthru
      _
    // Predicated region
    $region38: #{tpu_custom_call.1} parent=1 // pred_check
      _
    $region39: #{tpu_custom_call.1} parent=1 // pred_check_branch
      %103 = sbr.rel (0) target = $region41
    $region40: #{tpu_custom_call.1} parent=1 // pred_region
      %105 = dma.done [#allocation9], 256
    $region41: #{tpu_custom_call.1} parent=1 // pred_fallthru
      _
    // Predicated region
    $region42: #{tpu_custom_call.1} parent=1 // pred_check
      _
    $region43: #{tpu_custom_call.1} parent=1 // pred_check_branch
      %107 = sbr.rel (0) target = $region45
    $region44: #{tpu_custom_call.1} parent=1 // pred_region
      %109 = dma.done [#allocation9], 1024
    $region45: #{tpu_custom_call.1} parent=1 // pred_fallthru
      _
    // Predicated region
    $region46: #{tpu_custom_call.1} parent=1 // pred_check
      _
    $region47: #{tpu_custom_call.1} parent=1 // pred_check_branch
      %111 = sbr.rel (0) target = $region49
    $region48: #{tpu_custom_call.1} parent=1 // pred_region
      %113 = dma.done [#allocation12], 1024
    $region49: #{tpu_custom_call.1} parent=1 // pred_fallthru
      _
    %v115 = vld [vmem:[#allocation2] sm:$0xf]
    %v116 = vld [vmem:[#allocation7] sm:$0xf]
    %v117 = vld [vmem:[#allocation7 + $0x4] sm:$0xf]
    %v118 = vld [vmem:[#allocation7 + $0x8] sm:$0xf]
    %v119 = vld [vmem:[#allocation7 + $0xc] sm:$0xf]
    %v120 = vld [vmem:[#allocation5] sm:$0xf]
    %v121 = vld [vmem:[#allocation8] sm:$0xf]
    %v122 = vld [vmem:[#allocation8 + $0x4] sm:$0xf]
    %v123 = vld [vmem:[#allocation8 + $0x8] sm:$0xf]
    %v124 = vld [vmem:[#allocation8 + $0xc] sm:$0xf]
    %v129 = vunpack.c.l.b16 %v121
    %v130 = vunpack.c.l.b16 %v122
    %v131 = vunpack.c.l.b16 %v123
    %v132 = vunpack.c.l.b16 %v124
    %v133 = vpack.c.b16 %v130, %v129
    %v134 = vpack.c.b16 %v132, %v131
    %vm137 = vcmask 261120
    %v139 = vsel %vm137, %v120, 0
    %141 = vmatpush.bf16.msra.mxu0 0
    %142 = vmatpush.bf16.msra.mxu0 0
    %143 = vmatpush.bf16.msra.mxu0 0
    %144 = vmatpush.bf16.msra.mxu0 0
    %145 = vmatpush.bf16.msra.mxu0 0
    %146 = vmatpush.bf16.msra.mxu0 0
    %147 = vmatpush.bf16.msra.mxu0 %v134
    %148 = vmatpush.bf16.msra.mxu0 %v133
    %149 = vmatmul.bf16.gmra.mxu0 %v139
    %v150 = vpop.f32.mrf.mxu0
    %v151 = vadd.f32 0.0, %v150
    %v152 = vpop.f32.mrf.mxu0
    %153 = vdwg.mxu0
    %v158 = vunpack.c.l.b16 %v116
    %v159 = vunpack.c.l.b16 %v117
    %v160 = vunpack.c.l.b16 %v118
    %v161 = vunpack.c.l.b16 %v119
    %v162 = vpack.c.b16 %v159, %v158
    %v163 = vpack.c.b16 %v161, %v160
    %v167 = vsel %vm137, %v115, 0
    %169 = vmatpush.bf16.msra.mxu0 0
    %170 = vmatpush.bf16.msra.mxu0 0
    %171 = vmatpush.bf16.msra.mxu0 0
    %172 = vmatpush.bf16.msra.mxu0 0
    %173 = vmatpush.bf16.msra.mxu0 0
    %174 = vmatpush.bf16.msra.mxu0 0
    %175 = vmatpush.bf16.msra.mxu0 %v163
    %176 = vmatpush.bf16.msra.mxu0 %v162
    %177 = vmatmul.bf16.gmra.mxu0 %v167
    %v178 = vpop.f32.mrf.mxu0
    %v179 = vadd.f32 %v151, %v178
    %v180 = vpop.f32.mrf.mxu0
    %181 = vdwg.mxu0
    %v182 = vmax.f32 %v179, 0.0
    %v183 = vpack.c.bf16 %v182, %v182
    %v184 = vld [vmem:[#allocation10] sm:$0xf]
    %v185 = vld [vmem:[#allocation10 + $0x4] sm:$0xf]
    %v186 = vld [vmem:[#allocation10 + $0x8] sm:$0xf]
    %v187 = vld [vmem:[#allocation10 + $0xc] sm:$0xf]
    %v188 = vld [vmem:[#allocation10 + $0x10] sm:$0xf]
    %v189 = vld [vmem:[#allocation10 + $0x14] sm:$0xf]
    %v190 = vld [vmem:[#allocation10 + $0x18] sm:$0xf]
    %v191 = vld [vmem:[#allocation10 + $0x1c] sm:$0xf]
    %v192 = vld [vmem:[#allocation10 + $0x20] sm:$0xf]
    %v193 = vld [vmem:[#allocation10 + $0x24] sm:$0xf]
    %v194 = vld [vmem:[#allocation10 + $0x28] sm:$0xf]
    %v195 = vld [vmem:[#allocation10 + $0x2c] sm:$0xf]
    %v196 = vld [vmem:[#allocation10 + $0x30] sm:$0xf]
    %v197 = vld [vmem:[#allocation10 + $0x34] sm:$0xf]
    %v198 = vld [vmem:[#allocation10 + $0x38] sm:$0xf]
    %v199 = vld [vmem:[#allocation10 + $0x3c] sm:$0xf]
    %v216 = vunpack.c.l.b16 %v184
    %v217 = vunpack.c.l.b16 %v185
    %v218 = vunpack.c.l.b16 %v186
    %v219 = vunpack.c.l.b16 %v187
    %v220 = vunpack.c.l.b16 %v188
    %v221 = vunpack.c.l.b16 %v189
    %v222 = vunpack.c.l.b16 %v190
    %v223 = vunpack.c.l.b16 %v191
    %v224 = vunpack.c.l.b16 %v192
    %v225 = vunpack.c.l.b16 %v193
    %v226 = vunpack.c.l.b16 %v194
    %v227 = vunpack.c.l.b16 %v195
    %v228 = vunpack.c.l.b16 %v196
    %v229 = vunpack.c.l.b16 %v197
    %v230 = vunpack.c.l.b16 %v198
    %v231 = vunpack.c.l.b16 %v199
    %v232 = vpack.c.b16 %v217, %v216
    %v233 = vpack.c.b16 %v219, %v218
    %v234 = vpack.c.b16 %v221, %v220
    %v235 = vpack.c.b16 %v223, %v222
    %v236 = vpack.c.b16 %v225, %v224
    %v237 = vpack.c.b16 %v227, %v226
    %v238 = vpack.c.b16 %v229, %v228
    %v239 = vpack.c.b16 %v231, %v230
    %248 = vmatpush.bf16.msra.mxu0 %v239
    %249 = vmatpush.bf16.msra.mxu0 %v238
    %250 = vmatpush.bf16.msra.mxu0 %v237
    %251 = vmatpush.bf16.msra.mxu0 %v236
    %252 = vmatpush.bf16.msra.mxu0 %v235
    %253 = vmatpush.bf16.msra.mxu0 %v234
    %254 = vmatpush.bf16.msra.mxu0 %v233
    %255 = vmatpush.bf16.msra.mxu0 %v232
    %256 = vmatmul.bf16.gmra.mxu0 %v183
    %v257 = vpop.f32.mrf.mxu0
    %v258 = vadd.f32 0.0, %v257
    %v259 = vpop.f32.mrf.mxu0
    %260 = vdwg.mxu0
    %v261 = vmax.f32 %v258, 0.0
    %v262 = vpack.c.bf16 %v261, %v261
    %v263 = vld [vmem:[#allocation11] sm:$0xf]
    %v264 = vld [vmem:[#allocation11 + $0x4] sm:$0xf]
    %v265 = vld [vmem:[#allocation11 + $0x8] sm:$0xf]
    %v266 = vld [vmem:[#allocation11 + $0xc] sm:$0xf]
    %v267 = vld [vmem:[#allocation11 + $0x10] sm:$0xf]
    %v268 = vld [vmem:[#allocation11 + $0x14] sm:$0xf]
    %v269 = vld [vmem:[#allocation11 + $0x18] sm:$0xf]
    %v270 = vld [vmem:[#allocation11 + $0x1c] sm:$0xf]
    %v271 = vld [vmem:[#allocation11 + $0x20] sm:$0xf]
    %v272 = vld [vmem:[#allocation11 + $0x24] sm:$0xf]
    %v273 = vld [vmem:[#allocation11 + $0x28] sm:$0xf]
    %v274 = vld [vmem:[#allocation11 + $0x2c] sm:$0xf]
    %v275 = vld [vmem:[#allocation11 + $0x30] sm:$0xf]
    %v276 = vld [vmem:[#allocation11 + $0x34] sm:$0xf]
    %v277 = vld [vmem:[#allocation11 + $0x38] sm:$0xf]
    %v278 = vld [vmem:[#allocation11 + $0x3c] sm:$0xf]
    %v295 = vunpack.c.l.b16 %v263
    %v296 = vunpack.c.l.b16 %v264
    %v297 = vunpack.c.l.b16 %v265
    %v298 = vunpack.c.l.b16 %v266
    %v299 = vunpack.c.l.b16 %v267
    %v300 = vunpack.c.l.b16 %v268
    %v301 = vunpack.c.l.b16 %v269
    %v302 = vunpack.c.l.b16 %v270
    %v303 = vunpack.c.l.b16 %v271
    %v304 = vunpack.c.l.b16 %v272
    %v305 = vunpack.c.l.b16 %v273
    %v306 = vunpack.c.l.b16 %v274
    %v307 = vunpack.c.l.b16 %v275
    %v308 = vunpack.c.l.b16 %v276
    %v309 = vunpack.c.l.b16 %v277
    %v310 = vunpack.c.l.b16 %v278
    %v311 = vpack.c.b16 %v296, %v295
    %v312 = vpack.c.b16 %v298, %v297
    %v313 = vpack.c.b16 %v300, %v299
    %v314 = vpack.c.b16 %v302, %v301
    %v315 = vpack.c.b16 %v304, %v303
    %v316 = vpack.c.b16 %v306, %v305
    %v317 = vpack.c.b16 %v308, %v307
    %v318 = vpack.c.b16 %v310, %v309
    %327 = vmatpush.bf16.msra.mxu0 %v318
    %328 = vmatpush.bf16.msra.mxu0 %v317
    %329 = vmatpush.bf16.msra.mxu0 %v316
    %330 = vmatpush.bf16.msra.mxu0 %v315
    %331 = vmatpush.bf16.msra.mxu0 %v314
    %332 = vmatpush.bf16.msra.mxu0 %v313
    %333 = vmatpush.bf16.msra.mxu0 %v312
    %334 = vmatpush.bf16.msra.mxu0 %v311
    %335 = vmatmul.bf16.gmra.mxu0 %v262
    %v336 = vpop.f32.mrf.mxu0
    %v337 = vadd.f32 0.0, %v336
    %v338 = vpop.f32.mrf.mxu0
    %339 = vdwg.mxu0
    %340 = vst [vmem:[#allocation13] sm:$0xff] %v337
    // Predicated region
    $region50: #{tpu_custom_call.1} parent=1 // pred_check
      _
    $region51: #{tpu_custom_call.1} parent=1 // pred_check_branch
      %342 = sbr.rel (0) target = $region53
    $region52: #{tpu_custom_call.1} parent=1 // pred_region
      %344 = vsyncadd [#allocation4], 0
      %s346 = sshll.u32 [#allocation13], 4
      %s347 = int_to_ptr.vmem [resolvable:$true] %s346
      %s348 = sshll.u32 %s6, 4
      %s349 = int_to_ptr.hbm [resolvable:$true] %s348
      %351 = dma.vmem_to_hbm [thread:$0]  %s347, 128, %s349, [#allocation4]
    $region53: #{tpu_custom_call.1} parent=1 // pred_fallthru
      _
    // Predicated region
    $region54: #{tpu_custom_call.1} parent=1 // pred_check
      _
    $region55: #{tpu_custom_call.1} parent=1 // pred_check_branch
      %353 = sbr.rel (0) target = $region57
    $region56: #{tpu_custom_call.1} parent=1 // pred_region
      %355 = dma.done [#allocation4], 128
    $region57: #{tpu_custom_call.1} parent=1 // pred_fallthru
      _
    %356 = vsyncpa [#allocation3], 1
    %357 = vsyncpa [#allocation6], 1
    %358 = vsyncpa [#allocation9], 1
    %359 = vsyncpa [#allocation12], 1
    %360 = vsyncpa [#allocation4], 1

</llo_original>
